<compile_context>
chip_gen: v7x
topology: tpu7x:2x2x1
jax: 0.10.0
libtpu: 0.0.40
codegen_flags: <defaults>
</compile_context>

<pallas_src>
import jax
import jax.numpy as jnp
from jax.experimental import pallas as pl
from jax.experimental.pallas import tpu as pltpu


_MAX_DMA_CHUNKS = 4  # 2-4 concurrent DMAs are enough to saturate HBM.


def _chunk_ranges(total, itemsize, max_chunks=_MAX_DMA_CHUNKS):
    """Split [0, total) into <= max_chunks contiguous ranges with 512B-aligned
    starts (ragged tail allowed). All values are static Python ints."""
    base = -(-total // max_chunks)            # ceil div
    align = max(1, 512 // itemsize)           # 512-byte aligned chunk starts
    if base > align:
        base = -(-base // align) * align
    chunks = []
    start = 0
    while start < total:
        size = min(base, total - start)
        chunks.append((start, size))
        start += size
    return tuple(chunks)


def _make_hbm_copy_kernel(chunks):
    """Kernel: direct HBM->HBM DMA copy of a (1, total) slab.

    All chunk DMAs are issued before any wait, so they overlap; each chunk is
    a contiguous byte range, so the DMA engine runs at HBM roofline without
    staging through VMEM.
    """
    def kernel(x_hbm, o_hbm, sems):
        copies = []
        for idx, (start, size) in enumerate(chunks):
            cp = pltpu.make_async_copy(
                x_hbm.at[:, pl.ds(start, size)],
                o_hbm.at[:, pl.ds(start, size)],
                sems.at[idx],
            )
            cp.start()
            copies.append(cp)
        for cp in copies:      # transfers already in flight; just drain
            cp.wait()
    return kernel


@jax.jit
def just_reshape(x):
    """Pallas implementation of JustReshape.forward.

    x: (N, C, H, W) -> array of shape (N, C, W, H) with the SAME row-major
    element order (torch .view semantics, not a transpose).
    """
    n, c, h, w = x.shape
    out_shape = (n, c, w, h)
    total = n * c * h * w
    dtype = x.dtype
    itemsize = jnp.dtype(dtype).itemsize

    chunks = _chunk_ranges(total, itemsize)

    # Flat, contiguous (1, total) slab: handles every shape (no 128/8
    # divisibility fallbacks). Under jit this reshape is metadata-only.
    x_flat = x.reshape(1, total)

    out_flat = pl.pallas_call(
        _make_hbm_copy_kernel(chunks),
        out_shape=jax.ShapeDtypeStruct((1, total), dtype),
        in_specs=[pl.BlockSpec(memory_space=pl.ANY)],    # raw HBM ref, no auto-DMA
        out_specs=pl.BlockSpec(memory_space=pl.ANY),     # raw HBM ref, written by DMA
        scratch_shapes=[pltpu.SemaphoreType.DMA((len(chunks),))],
        cost_estimate=pl.CostEstimate(
            flops=0, transcendentals=0, bytes_accessed=2 * total * itemsize),
    )(x_flat)

    # TODO(synk): when the caller can donate x, add input_output_aliases={0: 0}
    # and drop the DMA body entirely -- the reshape is then metadata-only
    # (zero HBM traffic). Not done here because donation isn't guaranteed.

    # Reinterpret the flat buffer with swapped trailing dims (metadata-only).
    return out_flat.reshape(out_shape)


if __name__ == "__main__":
    key = jax.random.PRNGKey(0)

    # N=2, C=4, H=16, W=8 (H != W so the "view" reinterpretation is exercised).
    x = jax.random.normal(key, (2, 4, 16, 8), dtype=jnp.float32)
    out = just_reshape(x)
    jax.block_until_ready(out)

    # Reference: torch .view((N, C, W, H)) == row-major reshape.
    n, c, h, w = x.shape
    ref = jnp.reshape(x, (n, c, w, h))
    assert out.shape == ref.shape, (out.shape, ref.shape)
    assert out.dtype == ref.dtype, (out.dtype, ref.dtype)
    assert bool(jnp.array_equal(out, ref)), "mismatch vs reference reshape"

    # Odd-sized tensor (element count not divisible by 128): exercises the
    # ragged-tail DMA chunking -- there is no whole-array fallback path anymore.
    x2 = jax.random.normal(key, (3, 5, 7, 11), dtype=jnp.float32)
    out2 = just_reshape(x2)
    jax.block_until_ready(out2)
    ref2 = jnp.reshape(x2, (3, 5, 11, 7))
    assert out2.shape == ref2.shape, (out2.shape, ref2.shape)
    assert bool(jnp.array_equal(out2, ref2)), "mismatch on odd-sized input"

    print("KERNEL_OK")
</pallas_src>

<mosaic_0001>
module attributes {stable_mosaic.version = 11 : i64} {
  func.func @kernel(%arg0: memref<1x1024xf32, #tpu.memory_space<any>>, %arg1: memref<1x1024xf32, #tpu.memory_space<any>>, %arg2: memref<4x!tpu.dma_semaphore, #tpu.memory_space<semaphore_mem>>) attributes {dimension_semantics = [], scalar_prefetch = 0 : i64, scratch_operands = 1 : i64, tpu.core_type = #tpu.core_type<tc>} {
    %c0_i32 = arith.constant 0 : i32
    %c0_i32_0 = arith.constant 0 : i32
    %c0_i32_1 = arith.constant 0 : i32
    %0 = tpu.memref_slice %arg0[%c0_i32_0, %c0_i32_1] : memref<1x1024xf32, #tpu.memory_space<any>> -> memref<1x256xf32, #tpu.memory_space<any>>
    %c0_i32_2 = arith.constant 0 : i32
    %c0_i32_3 = arith.constant 0 : i32
    %1 = tpu.memref_slice %arg1[%c0_i32_2, %c0_i32_3] : memref<1x1024xf32, #tpu.memory_space<any>> -> memref<1x256xf32, #tpu.memory_space<any>>
    %2 = tpu.memref_slice %arg2[%c0_i32] : memref<4x!tpu.dma_semaphore, #tpu.memory_space<semaphore_mem>> -> memref<1x!tpu.dma_semaphore, #tpu.memory_space<semaphore_mem>>
    %3 = tpu.memref_squeeze %2 : memref<1x!tpu.dma_semaphore, #tpu.memory_space<semaphore_mem>> -> memref<!tpu.dma_semaphore, #tpu.memory_space<semaphore_mem>>
    tpu.enqueue_dma source(%0 : memref<1x256xf32, #tpu.memory_space<any>>) target(%1 : memref<1x256xf32, #tpu.memory_space<any>>) target_semaphore(%3 : memref<!tpu.dma_semaphore, #tpu.memory_space<semaphore_mem>>)
    %c1_i32 = arith.constant 1 : i32
    %c0_i32_4 = arith.constant 0 : i32
    %c256_i32 = arith.constant 256 : i32
    %4 = tpu.memref_slice %arg0[%c0_i32_4, %c256_i32] : memref<1x1024xf32, #tpu.memory_space<any>> -> memref<1x256xf32, #tpu.memory_space<any>>
    %c0_i32_5 = arith.constant 0 : i32
    %c256_i32_6 = arith.constant 256 : i32
    %5 = tpu.memref_slice %arg1[%c0_i32_5, %c256_i32_6] : memref<1x1024xf32, #tpu.memory_space<any>> -> memref<1x256xf32, #tpu.memory_space<any>>
    %6 = tpu.memref_slice %arg2[%c1_i32] : memref<4x!tpu.dma_semaphore, #tpu.memory_space<semaphore_mem>> -> memref<1x!tpu.dma_semaphore, #tpu.memory_space<semaphore_mem>>
    %7 = tpu.memref_squeeze %6 : memref<1x!tpu.dma_semaphore, #tpu.memory_space<semaphore_mem>> -> memref<!tpu.dma_semaphore, #tpu.memory_space<semaphore_mem>>
    tpu.enqueue_dma source(%4 : memref<1x256xf32, #tpu.memory_space<any>>) target(%5 : memref<1x256xf32, #tpu.memory_space<any>>) target_semaphore(%7 : memref<!tpu.dma_semaphore, #tpu.memory_space<semaphore_mem>>)
    %c2_i32 = arith.constant 2 : i32
    %c0_i32_7 = arith.constant 0 : i32
    %c512_i32 = arith.constant 512 : i32
    %8 = tpu.memref_slice %arg0[%c0_i32_7, %c512_i32] : memref<1x1024xf32, #tpu.memory_space<any>> -> memref<1x256xf32, #tpu.memory_space<any>>
    %c0_i32_8 = arith.constant 0 : i32
    %c512_i32_9 = arith.constant 512 : i32
    %9 = tpu.memref_slice %arg1[%c0_i32_8, %c512_i32_9] : memref<1x1024xf32, #tpu.memory_space<any>> -> memref<1x256xf32, #tpu.memory_space<any>>
    %10 = tpu.memref_slice %arg2[%c2_i32] : memref<4x!tpu.dma_semaphore, #tpu.memory_space<semaphore_mem>> -> memref<1x!tpu.dma_semaphore, #tpu.memory_space<semaphore_mem>>
    %11 = tpu.memref_squeeze %10 : memref<1x!tpu.dma_semaphore, #tpu.memory_space<semaphore_mem>> -> memref<!tpu.dma_semaphore, #tpu.memory_space<semaphore_mem>>
    tpu.enqueue_dma source(%8 : memref<1x256xf32, #tpu.memory_space<any>>) target(%9 : memref<1x256xf32, #tpu.memory_space<any>>) target_semaphore(%11 : memref<!tpu.dma_semaphore, #tpu.memory_space<semaphore_mem>>)
    %c3_i32 = arith.constant 3 : i32
    %c0_i32_10 = arith.constant 0 : i32
    %c768_i32 = arith.constant 768 : i32
    %12 = tpu.memref_slice %arg0[%c0_i32_10, %c768_i32] : memref<1x1024xf32, #tpu.memory_space<any>> -> memref<1x256xf32, #tpu.memory_space<any>>
    %c0_i32_11 = arith.constant 0 : i32
    %c768_i32_12 = arith.constant 768 : i32
    %13 = tpu.memref_slice %arg1[%c0_i32_11, %c768_i32_12] : memref<1x1024xf32, #tpu.memory_space<any>> -> memref<1x256xf32, #tpu.memory_space<any>>
    %14 = tpu.memref_slice %arg2[%c3_i32] : memref<4x!tpu.dma_semaphore, #tpu.memory_space<semaphore_mem>> -> memref<1x!tpu.dma_semaphore, #tpu.memory_space<semaphore_mem>>
    %15 = tpu.memref_squeeze %14 : memref<1x!tpu.dma_semaphore, #tpu.memory_space<semaphore_mem>> -> memref<!tpu.dma_semaphore, #tpu.memory_space<semaphore_mem>>
    tpu.enqueue_dma source(%12 : memref<1x256xf32, #tpu.memory_space<any>>) target(%13 : memref<1x256xf32, #tpu.memory_space<any>>) target_semaphore(%15 : memref<!tpu.dma_semaphore, #tpu.memory_space<semaphore_mem>>)
    %c0_i32_13 = arith.constant 0 : i32
    %c0_i32_14 = arith.constant 0 : i32
    %c0_i32_15 = arith.constant 0 : i32
    %16 = tpu.memref_slice %arg0[%c0_i32_14, %c0_i32_15] : memref<1x1024xf32, #tpu.memory_space<any>> -> memref<1x256xf32, #tpu.memory_space<any>>
    %c0_i32_16 = arith.constant 0 : i32
    %c0_i32_17 = arith.constant 0 : i32
    %17 = tpu.memref_slice %arg1[%c0_i32_16, %c0_i32_17] : memref<1x1024xf32, #tpu.memory_space<any>> -> memref<1x256xf32, #tpu.memory_space<any>>
    %18 = tpu.memref_slice %arg2[%c0_i32_13] : memref<4x!tpu.dma_semaphore, #tpu.memory_space<semaphore_mem>> -> memref<1x!tpu.dma_semaphore, #tpu.memory_space<semaphore_mem>>
    %19 = tpu.memref_squeeze %18 : memref<1x!tpu.dma_semaphore, #tpu.memory_space<semaphore_mem>> -> memref<!tpu.dma_semaphore, #tpu.memory_space<semaphore_mem>>
    tpu.wait_dma2 semaphore(%19 : memref<!tpu.dma_semaphore, #tpu.memory_space<semaphore_mem>>) src(%16 : memref<1x256xf32, #tpu.memory_space<any>>) dst(%17 : memref<1x256xf32, #tpu.memory_space<any>>)
    %c1_i32_18 = arith.constant 1 : i32
    %c0_i32_19 = arith.constant 0 : i32
    %c256_i32_20 = arith.constant 256 : i32
    %20 = tpu.memref_slice %arg0[%c0_i32_19, %c256_i32_20] : memref<1x1024xf32, #tpu.memory_space<any>> -> memref<1x256xf32, #tpu.memory_space<any>>
    %c0_i32_21 = arith.constant 0 : i32
    %c256_i32_22 = arith.constant 256 : i32
    %21 = tpu.memref_slice %arg1[%c0_i32_21, %c256_i32_22] : memref<1x1024xf32, #tpu.memory_space<any>> -> memref<1x256xf32, #tpu.memory_space<any>>
    %22 = tpu.memref_slice %arg2[%c1_i32_18] : memref<4x!tpu.dma_semaphore, #tpu.memory_space<semaphore_mem>> -> memref<1x!tpu.dma_semaphore, #tpu.memory_space<semaphore_mem>>
    %23 = tpu.memref_squeeze %22 : memref<1x!tpu.dma_semaphore, #tpu.memory_space<semaphore_mem>> -> memref<!tpu.dma_semaphore, #tpu.memory_space<semaphore_mem>>
    tpu.wait_dma2 semaphore(%23 : memref<!tpu.dma_semaphore, #tpu.memory_space<semaphore_mem>>) src(%20 : memref<1x256xf32, #tpu.memory_space<any>>) dst(%21 : memref<1x256xf32, #tpu.memory_space<any>>)
    %c2_i32_23 = arith.constant 2 : i32
    %c0_i32_24 = arith.constant 0 : i32
    %c512_i32_25 = arith.constant 512 : i32
    %24 = tpu.memref_slice %arg0[%c0_i32_24, %c512_i32_25] : memref<1x1024xf32, #tpu.memory_space<any>> -> memref<1x256xf32, #tpu.memory_space<any>>
    %c0_i32_26 = arith.constant 0 : i32
    %c512_i32_27 = arith.constant 512 : i32
    %25 = tpu.memref_slice %arg1[%c0_i32_26, %c512_i32_27] : memref<1x1024xf32, #tpu.memory_space<any>> -> memref<1x256xf32, #tpu.memory_space<any>>
    %26 = tpu.memref_slice %arg2[%c2_i32_23] : memref<4x!tpu.dma_semaphore, #tpu.memory_space<semaphore_mem>> -> memref<1x!tpu.dma_semaphore, #tpu.memory_space<semaphore_mem>>
    %27 = tpu.memref_squeeze %26 : memref<1x!tpu.dma_semaphore, #tpu.memory_space<semaphore_mem>> -> memref<!tpu.dma_semaphore, #tpu.memory_space<semaphore_mem>>
    tpu.wait_dma2 semaphore(%27 : memref<!tpu.dma_semaphore, #tpu.memory_space<semaphore_mem>>) src(%24 : memref<1x256xf32, #tpu.memory_space<any>>) dst(%25 : memref<1x256xf32, #tpu.memory_space<any>>)
    %c3_i32_28 = arith.constant 3 : i32
    %c0_i32_29 = arith.constant 0 : i32
    %c768_i32_30 = arith.constant 768 : i32
    %28 = tpu.memref_slice %arg0[%c0_i32_29, %c768_i32_30] : memref<1x1024xf32, #tpu.memory_space<any>> -> memref<1x256xf32, #tpu.memory_space<any>>
    %c0_i32_31 = arith.constant 0 : i32
    %c768_i32_32 = arith.constant 768 : i32
    %29 = tpu.memref_slice %arg1[%c0_i32_31, %c768_i32_32] : memref<1x1024xf32, #tpu.memory_space<any>> -> memref<1x256xf32, #tpu.memory_space<any>>
    %30 = tpu.memref_slice %arg2[%c3_i32_28] : memref<4x!tpu.dma_semaphore, #tpu.memory_space<semaphore_mem>> -> memref<1x!tpu.dma_semaphore, #tpu.memory_space<semaphore_mem>>
    %31 = tpu.memref_squeeze %30 : memref<1x!tpu.dma_semaphore, #tpu.memory_space<semaphore_mem>> -> memref<!tpu.dma_semaphore, #tpu.memory_space<semaphore_mem>>
    tpu.wait_dma2 semaphore(%31 : memref<!tpu.dma_semaphore, #tpu.memory_space<semaphore_mem>>) src(%28 : memref<1x256xf32, #tpu.memory_space<any>>) dst(%29 : memref<1x256xf32, #tpu.memory_space<any>>)
    return
  }
}

</mosaic_0001>

<llo_original>
// kernel: just_reshape.1
$region0: #{just_reshape.1}
  #allocation0 [shape = 'u32[]', space=smem, size = 0x4, offset = 0x4, fixed_abs, tag = 'smem constant byte address 0x4 - core index']
  #allocation1 [shape = 'u32[144,128]{1,0:T(1,128)}', space=vmem, size = 0x12000, scoped, tag = 'internal scratch']
  #allocation2 [shape = 's32[4]{0}', space=sflag, size = 0x10, scoped, tag = 'scratch operand']
  #allocation3 [shape = 's32[]', space=sflag, size = 0x4, offset = 0, fixed_abs, tag = 'sflag constant byte address 0x0 - dummy sync flag']
  #allocation4 [shape = 's32[]', space=sflag, size = 0x4, offset = 0, fixed_abs, tag = 'sflag constant byte address 0x0 - dummy sync flag']
  #allocation5 [shape = 's32[]', space=sflag, size = 0x4, offset = 0, fixed_abs, tag = 'sflag constant byte address 0x0 - dummy sync flag']
  #allocation6 [shape = 's32[]', space=sflag, size = 0x4, offset = 0, fixed_abs, tag = 'sflag constant byte address 0x0 - dummy sync flag']
  %s0 = inlined_call_operand.vmem [shape: f32[1,1024], index: 0, kind: input, shape index: {}]
  %s1 = inlined_call_operand.vmem [shape: f32[1,1024], index: 1, kind: output, shape index: {}]
  %s2 = sld [smem:[#allocation0]]
  $region122: #{just_reshape.1} parent=0
    _
  %s4 = ssub.s32 1, %s2
  %s5 = scalar_select 0, %s4, %s2
  %p7 = scmp.lt.u32.totalorder 2, 8
  %p8 = pneg %p7
  // Predicated region
  $region2: #{just_reshape.1} parent=0 // pred_check
    _
  $region3: #{just_reshape.1} parent=0 // pred_check_branch
    %10 = sbr.rel (%p7) target = $region5
  $region4: #{just_reshape.1} parent=0 // pred_region
    %s25 = sand.u32 2, 7
    %p26 = scmp.eq.s32.totalorder %s25, 0
    %p27 = pneg %p26
    // Predicated region
    $region17: #{just_reshape.1} parent=4 // pred_check
      _
    $region18: #{just_reshape.1} parent=4 // pred_check_branch
      %29 = sbr.rel (%p26) target = $region20
    $region19: #{just_reshape.1} parent=4 // pred_region
      %s30 = sand.u32 2, 7
      %s31 = ssub.s32 2, %s30
      %s32 = scalar_lea.vmem %s0, %s31
      %s33 = ssub.s32 2, %s30
      %s34 = scalar_lea.vmem %s1, %s33
      %s35 = sshllo.u32 0, %s30
      loop: start=0, step=1, limit=1
      $region21: #{just_reshape.1} parent=19 // loop_pre_header
        _
      $region22: #{just_reshape.1} parent=19 // loop_header
        %s37 = sphi 0, %s41
        %p38 = scmp.ge.s32.totalorder %s37, 1
        %s42 = sphi %s32, %s32
        %s43 = sphi %s34, %s34
      $region23: #{just_reshape.1} parent=19 // loop_header_branch
        %40 = sbr.rel (%p38) target = $region27
      $region24: #{just_reshape.1} parent=19 // loop_body
        %v44 = vld [vmem:[%s42] sm:%s35]
        %45 = vst [vmem:[%s43] sm:%s35] %v44
      $region25: #{just_reshape.1} parent=19 // loop_footer
        %s41 = sadd.s32 1, %s37
      $region26: #{just_reshape.1} parent=19 // loop_footer_branch
        %36 = sbr.rel target = $region22
      $region27: #{just_reshape.1} parent=19 // loop_exit
        _
    $region20: #{just_reshape.1} parent=4 // pred_fallthru
      _
  $region5: #{just_reshape.1} parent=0 // pred_fallthru
    _
  // Predicated region
  $region6: #{just_reshape.1} parent=0 // pred_check
    %p11 = pneg %p7
  $region7: #{just_reshape.1} parent=0 // pred_check_branch
    %13 = sbr.rel (%p11) target = $region9
  $region8: #{just_reshape.1} parent=0 // pred_region
    %s14 = sshllo.u32 0, 2
    loop: start=0, step=1, limit=1
    $region10: #{just_reshape.1} parent=8 // loop_pre_header
      _
    $region11: #{just_reshape.1} parent=8 // loop_header
      %s16 = sphi 0, %s20
      %p17 = scmp.ge.s32.totalorder %s16, 1
      %s21 = sphi %s0, %s0
      %s22 = sphi %s1, %s1
    $region12: #{just_reshape.1} parent=8 // loop_header_branch
      %19 = sbr.rel (%p17) target = $region16
    $region13: #{just_reshape.1} parent=8 // loop_body
      %v23 = vld [vmem:[%s21] sm:%s14]
      %24 = vst [vmem:[%s22] sm:%s14] %v23
    $region14: #{just_reshape.1} parent=8 // loop_footer
      %s20 = sadd.s32 1, %s16
    $region15: #{just_reshape.1} parent=8 // loop_footer_branch
      %15 = sbr.rel target = $region11
    $region16: #{just_reshape.1} parent=8 // loop_exit
      _
  $region9: #{just_reshape.1} parent=0 // pred_fallthru
    _
  // Predicated region
  $region28: #{just_reshape.1} parent=0 // pred_check
    _
  $region29: #{just_reshape.1} parent=0 // pred_check_branch
    %48 = sbr.rel (0) target = $region31
  $region30: #{just_reshape.1} parent=0 // pred_region
    %49 = vsyncadd [#allocation2], 32
  $region31: #{just_reshape.1} parent=0 // pred_fallthru
    _
  %s50 = scalar_lea.vmem %s0, 2
  %s51 = scalar_lea.vmem %s1, 2
  %s52 = scalar_lea.sflag [#allocation2], 1
  %p54 = scmp.lt.u32.totalorder 2, 8
  %p55 = pneg %p54
  // Predicated region
  $region32: #{just_reshape.1} parent=0 // pred_check
    _
  $region33: #{just_reshape.1} parent=0 // pred_check_branch
    %57 = sbr.rel (%p54) target = $region35
  $region34: #{just_reshape.1} parent=0 // pred_region
    %s72 = sand.u32 2, 7
    %p73 = scmp.eq.s32.totalorder %s72, 0
    %p74 = pneg %p73
    // Predicated region
    $region47: #{just_reshape.1} parent=34 // pred_check
      _
    $region48: #{just_reshape.1} parent=34 // pred_check_branch
      %76 = sbr.rel (%p73) target = $region50
    $region49: #{just_reshape.1} parent=34 // pred_region
      %s77 = sand.u32 2, 7
      %s78 = ssub.s32 2, %s77
      %s79 = scalar_lea.vmem %s50, %s78
      %s80 = ssub.s32 2, %s77
      %s81 = scalar_lea.vmem %s51, %s80
      %s82 = sshllo.u32 0, %s77
      loop: start=0, step=1, limit=1
      $region51: #{just_reshape.1} parent=49 // loop_pre_header
        _
      $region52: #{just_reshape.1} parent=49 // loop_header
        %s84 = sphi 0, %s88
        %p85 = scmp.ge.s32.totalorder %s84, 1
        %s89 = sphi %s79, %s79
        %s90 = sphi %s81, %s81
      $region53: #{just_reshape.1} parent=49 // loop_header_branch
        %87 = sbr.rel (%p85) target = $region57
      $region54: #{just_reshape.1} parent=49 // loop_body
        %v91 = vld [vmem:[%s89] sm:%s82]
        %92 = vst [vmem:[%s90] sm:%s82] %v91
      $region55: #{just_reshape.1} parent=49 // loop_footer
        %s88 = sadd.s32 1, %s84
      $region56: #{just_reshape.1} parent=49 // loop_footer_branch
        %83 = sbr.rel target = $region52
      $region57: #{just_reshape.1} parent=49 // loop_exit
        _
    $region50: #{just_reshape.1} parent=34 // pred_fallthru
      _
  $region35: #{just_reshape.1} parent=0 // pred_fallthru
    _
  // Predicated region
  $region36: #{just_reshape.1} parent=0 // pred_check
    %p58 = pneg %p54
  $region37: #{just_reshape.1} parent=0 // pred_check_branch
    %60 = sbr.rel (%p58) target = $region39
  $region38: #{just_reshape.1} parent=0 // pred_region
    %s61 = sshllo.u32 0, 2
    loop: start=0, step=1, limit=1
    $region40: #{just_reshape.1} parent=38 // loop_pre_header
      _
    $region41: #{just_reshape.1} parent=38 // loop_header
      %s63 = sphi 0, %s67
      %p64 = scmp.ge.s32.totalorder %s63, 1
      %s68 = sphi %s50, %s50
      %s69 = sphi %s51, %s51
    $region42: #{just_reshape.1} parent=38 // loop_header_branch
      %66 = sbr.rel (%p64) target = $region46
    $region43: #{just_reshape.1} parent=38 // loop_body
      %v70 = vld [vmem:[%s68] sm:%s61]
      %71 = vst [vmem:[%s69] sm:%s61] %v70
    $region44: #{just_reshape.1} parent=38 // loop_footer
      %s67 = sadd.s32 1, %s63
    $region45: #{just_reshape.1} parent=38 // loop_footer_branch
      %62 = sbr.rel target = $region41
    $region46: #{just_reshape.1} parent=38 // loop_exit
      _
  $region39: #{just_reshape.1} parent=0 // pred_fallthru
    _
  // Predicated region
  $region58: #{just_reshape.1} parent=0 // pred_check
    _
  $region59: #{just_reshape.1} parent=0 // pred_check_branch
    %95 = sbr.rel (0) target = $region61
  $region60: #{just_reshape.1} parent=0 // pred_region
    %96 = vsyncadd %s52, 32
  $region61: #{just_reshape.1} parent=0 // pred_fallthru
    _
  %s97 = scalar_lea.vmem %s0, 4
  %s98 = scalar_lea.vmem %s1, 4
  %s99 = scalar_lea.sflag [#allocation2], 2
  %p101 = scmp.lt.u32.totalorder 2, 8
  %p102 = pneg %p101
  // Predicated region
  $region62: #{just_reshape.1} parent=0 // pred_check
    _
  $region63: #{just_reshape.1} parent=0 // pred_check_branch
    %104 = sbr.rel (%p101) target = $region65
  $region64: #{just_reshape.1} parent=0 // pred_region
    %s119 = sand.u32 2, 7
    %p120 = scmp.eq.s32.totalorder %s119, 0
    %p121 = pneg %p120
    // Predicated region
    $region77: #{just_reshape.1} parent=64 // pred_check
      _
    $region78: #{just_reshape.1} parent=64 // pred_check_branch
      %123 = sbr.rel (%p120) target = $region80
    $region79: #{just_reshape.1} parent=64 // pred_region
      %s124 = sand.u32 2, 7
      %s125 = ssub.s32 2, %s124
      %s126 = scalar_lea.vmem %s97, %s125
      %s127 = ssub.s32 2, %s124
      %s128 = scalar_lea.vmem %s98, %s127
      %s129 = sshllo.u32 0, %s124
      loop: start=0, step=1, limit=1
      $region81: #{just_reshape.1} parent=79 // loop_pre_header
        _
      $region82: #{just_reshape.1} parent=79 // loop_header
        %s131 = sphi 0, %s135
        %p132 = scmp.ge.s32.totalorder %s131, 1
        %s136 = sphi %s126, %s126
        %s137 = sphi %s128, %s128
      $region83: #{just_reshape.1} parent=79 // loop_header_branch
        %134 = sbr.rel (%p132) target = $region87
      $region84: #{just_reshape.1} parent=79 // loop_body
        %v138 = vld [vmem:[%s136] sm:%s129]
        %139 = vst [vmem:[%s137] sm:%s129] %v138
      $region85: #{just_reshape.1} parent=79 // loop_footer
        %s135 = sadd.s32 1, %s131
      $region86: #{just_reshape.1} parent=79 // loop_footer_branch
        %130 = sbr.rel target = $region82
      $region87: #{just_reshape.1} parent=79 // loop_exit
        _
    $region80: #{just_reshape.1} parent=64 // pred_fallthru
      _
  $region65: #{just_reshape.1} parent=0 // pred_fallthru
    _
  // Predicated region
  $region66: #{just_reshape.1} parent=0 // pred_check
    %p105 = pneg %p101
  $region67: #{just_reshape.1} parent=0 // pred_check_branch
    %107 = sbr.rel (%p105) target = $region69
  $region68: #{just_reshape.1} parent=0 // pred_region
    %s108 = sshllo.u32 0, 2
    loop: start=0, step=1, limit=1
    $region70: #{just_reshape.1} parent=68 // loop_pre_header
      _
    $region71: #{just_reshape.1} parent=68 // loop_header
      %s110 = sphi 0, %s114
      %p111 = scmp.ge.s32.totalorder %s110, 1
      %s115 = sphi %s97, %s97
      %s116 = sphi %s98, %s98
    $region72: #{just_reshape.1} parent=68 // loop_header_branch
      %113 = sbr.rel (%p111) target = $region76
    $region73: #{just_reshape.1} parent=68 // loop_body
      %v117 = vld [vmem:[%s115] sm:%s108]
      %118 = vst [vmem:[%s116] sm:%s108] %v117
    $region74: #{just_reshape.1} parent=68 // loop_footer
      %s114 = sadd.s32 1, %s110
    $region75: #{just_reshape.1} parent=68 // loop_footer_branch
      %109 = sbr.rel target = $region71
    $region76: #{just_reshape.1} parent=68 // loop_exit
      _
  $region69: #{just_reshape.1} parent=0 // pred_fallthru
    _
  // Predicated region
  $region88: #{just_reshape.1} parent=0 // pred_check
    _
  $region89: #{just_reshape.1} parent=0 // pred_check_branch
    %142 = sbr.rel (0) target = $region91
  $region90: #{just_reshape.1} parent=0 // pred_region
    %143 = vsyncadd %s99, 32
  $region91: #{just_reshape.1} parent=0 // pred_fallthru
    _
  %s144 = scalar_lea.vmem %s0, 6
  %s145 = scalar_lea.vmem %s1, 6
  %s146 = scalar_lea.sflag [#allocation2], 3
  %p148 = scmp.lt.u32.totalorder 2, 8
  %p149 = pneg %p148
  // Predicated region
  $region92: #{just_reshape.1} parent=0 // pred_check
    _
  $region93: #{just_reshape.1} parent=0 // pred_check_branch
    %151 = sbr.rel (%p148) target = $region95
  $region94: #{just_reshape.1} parent=0 // pred_region
    %s166 = sand.u32 2, 7
    %p167 = scmp.eq.s32.totalorder %s166, 0
    %p168 = pneg %p167
    // Predicated region
    $region107: #{just_reshape.1} parent=94 // pred_check
      _
    $region108: #{just_reshape.1} parent=94 // pred_check_branch
      %170 = sbr.rel (%p167) target = $region110
    $region109: #{just_reshape.1} parent=94 // pred_region
      %s171 = sand.u32 2, 7
      %s172 = ssub.s32 2, %s171
      %s173 = scalar_lea.vmem %s144, %s172
      %s174 = ssub.s32 2, %s171
      %s175 = scalar_lea.vmem %s145, %s174
      %s176 = sshllo.u32 0, %s171
      loop: start=0, step=1, limit=1
      $region111: #{just_reshape.1} parent=109 // loop_pre_header
        _
      $region112: #{just_reshape.1} parent=109 // loop_header
        %s178 = sphi 0, %s182
        %p179 = scmp.ge.s32.totalorder %s178, 1
        %s183 = sphi %s173, %s173
        %s184 = sphi %s175, %s175
      $region113: #{just_reshape.1} parent=109 // loop_header_branch
        %181 = sbr.rel (%p179) target = $region117
      $region114: #{just_reshape.1} parent=109 // loop_body
        %v185 = vld [vmem:[%s183] sm:%s176]
        %186 = vst [vmem:[%s184] sm:%s176] %v185
      $region115: #{just_reshape.1} parent=109 // loop_footer
        %s182 = sadd.s32 1, %s178
      $region116: #{just_reshape.1} parent=109 // loop_footer_branch
        %177 = sbr.rel target = $region112
      $region117: #{just_reshape.1} parent=109 // loop_exit
        _
    $region110: #{just_reshape.1} parent=94 // pred_fallthru
      _
  $region95: #{just_reshape.1} parent=0 // pred_fallthru
    _
  // Predicated region
  $region96: #{just_reshape.1} parent=0 // pred_check
    %p152 = pneg %p148
  $region97: #{just_reshape.1} parent=0 // pred_check_branch
    %154 = sbr.rel (%p152) target = $region99
  $region98: #{just_reshape.1} parent=0 // pred_region
    %s155 = sshllo.u32 0, 2
    loop: start=0, step=1, limit=1
    $region100: #{just_reshape.1} parent=98 // loop_pre_header
      _
    $region101: #{just_reshape.1} parent=98 // loop_header
      %s157 = sphi 0, %s161
      %p158 = scmp.ge.s32.totalorder %s157, 1
      %s162 = sphi %s144, %s144
      %s163 = sphi %s145, %s145
    $region102: #{just_reshape.1} parent=98 // loop_header_branch
      %160 = sbr.rel (%p158) target = $region106
    $region103: #{just_reshape.1} parent=98 // loop_body
      %v164 = vld [vmem:[%s162] sm:%s155]
      %165 = vst [vmem:[%s163] sm:%s155] %v164
    $region104: #{just_reshape.1} parent=98 // loop_footer
      %s161 = sadd.s32 1, %s157
    $region105: #{just_reshape.1} parent=98 // loop_footer_branch
      %156 = sbr.rel target = $region101
    $region106: #{just_reshape.1} parent=98 // loop_exit
      _
  $region99: #{just_reshape.1} parent=0 // pred_fallthru
    _
  // Predicated region
  $region118: #{just_reshape.1} parent=0 // pred_check
    _
  $region119: #{just_reshape.1} parent=0 // pred_check_branch
    %189 = sbr.rel (0) target = $region121
  $region120: #{just_reshape.1} parent=0 // pred_region
    %190 = vsyncadd %s146, 32
  $region121: #{just_reshape.1} parent=0 // pred_fallthru
    _
  %s191 = smul.u32 1, 2
  %s192 = sshll.u32 %s191, 4
  %193 = dma.done [#allocation2], %s192
  %s194 = sshll.u32 %s191, 4
  %195 = dma.done %s52, %s194
  %s196 = sshll.u32 %s191, 4
  %197 = dma.done %s99, %s196
  %s198 = sshll.u32 %s191, 4
  %199 = dma.done %s146, %s198
  %200 = vsyncmov [#allocation2]
  %s201 = vpop.sfrf %200
  %p202 = scmp.eq.s32.totalorder %s201, 0
  %p203 = pneg %p202
  %205 = shalt.err (%p203)
  %s206 = scalar_lea.sflag [#allocation2], 1
  %207 = vsyncmov %s206
  %s208 = vpop.sfrf %207
  %p209 = scmp.eq.s32.totalorder %s208, 0
  %p210 = pneg %p209
  %212 = shalt.err (%p210)
  %s213 = scalar_lea.sflag [#allocation2], 2
  %214 = vsyncmov %s213
  %s215 = vpop.sfrf %214
  %p216 = scmp.eq.s32.totalorder %s215, 0
  %p217 = pneg %p216
  %219 = shalt.err (%p217)
  %s220 = scalar_lea.sflag [#allocation2], 3
  %221 = vsyncmov %s220
  %s222 = vpop.sfrf %221
  %p223 = scmp.eq.s32.totalorder %s222, 0
  %p224 = pneg %p223
  %226 = shalt.err (%p224)

</llo_original>
